<compile_context>
chip_gen: v7x
topology: tpu7x:2x2x1
jax: 0.10.0
libtpu: 0.0.40
codegen_flags: <defaults>
</compile_context>

<pallas_src>
import functools

import jax
import jax.numpy as jnp
from jax.experimental import pallas as pl
from jax.experimental.pallas import tpu as pltpu

IN_FEATURES = 28 * 28   # 784
HIDDEN = 128
N_CLASSES = 10
N_PAD = 128             # lane-dense output block; classes live in lanes 0..9


def _mlp_kernel(x_ref, w1_ref, b1_ref, w2_ref, b2_ref, out_ref):
    """One batch tile of the factor-folded CanonicalMnist forward.

    x_ref  : (Bt, 784)       input dtype (cast to bf16 in-kernel)
    w1_ref : (784, HIDDEN)   bf16   (factor-folded)
    b1_ref : (1, HIDDEN)     f32    (factor-folded)
    w2_ref : (HIDDEN, N_PAD) bf16   (factor-folded, N zero-padded to 128)
    b2_ref : (1, N_PAD)      f32    (factor-folded, N zero-padded to 128)
    out_ref: (Bt, N_PAD)     bf16   (valid classes in [:, :N_CLASSES])
    """
    # In-kernel VPU cast (hidden under the MXU matmul) — no wrapper-side copy.
    x = x_ref[...].astype(jnp.bfloat16)
    # Layer 1: single MXU matmul (bf16 operands, f32 accumulation) + bias + ReLU.
    h = jnp.dot(x, w1_ref[...], preferred_element_type=jnp.float32)
    h = jnp.maximum(h + b1_ref[...], 0.0)
    # Layer 2: single MXU matmul into a lane-dense (Bt, 128) output block.
    o = jnp.dot(h.astype(jnp.bfloat16), w2_ref[...],
                preferred_element_type=jnp.float32)
    out_ref[...] = (o + b2_ref[...]).astype(out_ref.dtype)


def fold_params(w1, b1, w2, b2, factor):
    """Fold canonical_factor into the weights (valid: ReLU comes after the sum).

    w1: (n, 784, 128), b1: (n, 128), w2: (n, 128, 10), b2: (n, 10), factor: (n,)
    Must be re-run whenever `factor` or the raw weights change (e.g. training).
    """
    f = factor.astype(jnp.float32)
    w1_eff = jnp.einsum("c,cki->ki", f, w1.astype(jnp.float32))   # (784, 128)
    b1_eff = jnp.einsum("c,ci->i", f, b1.astype(jnp.float32))     # (128,)
    w2_eff = jnp.einsum("c,cki->ki", f, w2.astype(jnp.float32))   # (128, 10)
    b2_eff = jnp.einsum("c,ci->i", f, b2.astype(jnp.float32))     # (10,)

    # Pad only N (10 -> 128) for a lane-dense output block; K stays at 784.
    w2_eff = jnp.pad(w2_eff, ((0, 0), (0, N_PAD - N_CLASSES)))
    b2_eff = jnp.pad(b2_eff, (0, N_PAD - N_CLASSES))

    return (w1_eff.astype(jnp.bfloat16),
            b1_eff.reshape(1, HIDDEN).astype(jnp.float32),
            w2_eff.astype(jnp.bfloat16),
            b2_eff.reshape(1, N_PAD).astype(jnp.float32))


def _round_up(x, m):
    return (x + m - 1) // m * m


def _cdiv(a, b):
    return -(-a // b)


@functools.partial(jax.jit, static_argnames=("block_b",))
def canonical_mnist_forward(x, w1_eff, b1_eff, w2_eff, b2_eff, block_b=1024):
    """x: (B, 1, 28, 28) or (B, 784). Params are the outputs of fold_params."""
    x2d = x.reshape(-1, IN_FEATURES)            # free (bitcast-equivalent) reshape
    B = x2d.shape[0]

    # --- batch tile selection (all trace-time Python arithmetic) -----------
    block_b = min(block_b, 2048)                # stay inside v5e's 16 MiB scoped VMEM
    n_tiles = max(_cdiv(B, block_b), 1)
    if B >= 32:
        n_tiles = max(n_tiles, 2)               # >=2 tiles so both v7x TCs get work
    if n_tiles > 1 and n_tiles % 2 == 1:
        n_tiles += 1                            # even split across the 2 TCs
    bt = min(block_b, _round_up(_cdiv(B, n_tiles), 16))   # mult. of 16 (bf16 sublanes)
    Bp = _round_up(B, bt)
    if Bp > B:                                  # pad batch only when strictly needed
        x2d = jnp.pad(x2d, ((0, Bp - B), (0, 0)))
    grid = (Bp // bt,)

    # Advisory cost hint for XLA's scheduler around the custom call.
    itemsize = jnp.dtype(x2d.dtype).itemsize
    cost = pl.CostEstimate(
        flops=2 * Bp * (IN_FEATURES * HIDDEN + HIDDEN * N_PAD),
        transcendentals=0,
        bytes_accessed=(Bp * IN_FEATURES * itemsize      # x read
                        + Bp * N_PAD * 2                 # bf16 out write
                        + w1_eff.size * 2 + w2_eff.size * 2
                        + b1_eff.size * 4 + b2_eff.size * 4))

    out = pl.pallas_call(
        _mlp_kernel,
        out_shape=jax.ShapeDtypeStruct((Bp, N_PAD), jnp.bfloat16),
        grid_spec=pltpu.PrefetchScalarGridSpec(
            num_scalar_prefetch=0,
            grid=grid,
            in_specs=[
                pl.BlockSpec((bt, IN_FEATURES), lambda i: (i, 0)),       # x tile
                pl.BlockSpec((IN_FEATURES, HIDDEN), lambda i: (0, 0)),   # W1_eff (resident)
                pl.BlockSpec((1, HIDDEN), lambda i: (0, 0)),             # b1_eff (resident)
                pl.BlockSpec((HIDDEN, N_PAD), lambda i: (0, 0)),         # W2_eff (resident)
                pl.BlockSpec((1, N_PAD), lambda i: (0, 0)),              # b2_eff (resident)
            ],
            out_specs=pl.BlockSpec((bt, N_PAD), lambda i: (i, 0)),
        ),
        compiler_params=pltpu.CompilerParams(
            dimension_semantics=("parallel",)),
        cost_estimate=cost,
    )(x2d, w1_eff, b1_eff, w2_eff, b2_eff)

    # Slice valid rows / classes and restore the module's f32-logit dtype.
    return out[:B, :N_CLASSES].astype(jnp.float32)


def reference_forward(x, w1, b1, w2, b2, factor):
    """Pure-JAX f32 reference matching the torch (interpolate=False) forward."""
    x2d = x.reshape(-1, IN_FEATURES).astype(jnp.float32)
    h_stack = jnp.stack([x2d @ w1[c] + b1[c] for c in range(w1.shape[0])], axis=-1)
    h = jnp.maximum(h_stack @ factor, 0.0)
    o_stack = jnp.stack([h @ w2[c] + b2[c] for c in range(w2.shape[0])], axis=-1)
    return o_stack @ factor


def init_params(key, n_canonical):
    """Deterministic init matching nn.Linear shapes.

    torch stores W as (out, in); we store the transpose (in, out) per canonical
    layer so the kernel/reference can do x @ W directly on the MXU.
    """
    k1, k2, k3, k4 = jax.random.split(key, 4)
    w1 = jax.random.normal(k1, (n_canonical, IN_FEATURES, HIDDEN), jnp.float32) * 0.02
    b1 = jax.random.normal(k2, (n_canonical, HIDDEN), jnp.float32) * 0.02
    w2 = jax.random.normal(k3, (n_canonical, HIDDEN, N_CLASSES), jnp.float32) * 0.02
    b2 = jax.random.normal(k4, (n_canonical, N_CLASSES), jnp.float32) * 0.02
    factor = jnp.full((n_canonical,), 1.0 / n_canonical, dtype=jnp.float32)
    return w1, b1, w2, b2, factor


if __name__ == "__main__":
    n_canonical = 3
    batch = 64           # small, but exercises a 2-tile pipelined batch grid

    key = jax.random.PRNGKey(0)
    kx, kp = jax.random.split(key)
    x = jax.random.normal(kx, (batch, 1, 28, 28), jnp.float32)  # NCHW MNIST-shaped input
    w1, b1, w2, b2, factor = init_params(kp, n_canonical)

    # Fold once (factor is a fixed 1/n parameter); redo if factor/weights change.
    w1_eff, b1_eff, w2_eff, b2_eff = fold_params(w1, b1, w2, b2, factor)

    out = canonical_mnist_forward(x, w1_eff, b1_eff, w2_eff, b2_eff)
    out = jax.block_until_ready(out)

    ref = reference_forward(x, w1, b1, w2, b2, factor)
    assert out.shape == (batch, N_CLASSES)
    # Kernel streams bf16 weights/activations and a bf16 output block (f32 MXU
    # accumulation); reference is pure f32, so allow bf16-level tolerance.
    assert jnp.allclose(out, ref, atol=5e-3, rtol=3e-2), "mismatch vs reference"

    print("KERNEL_OK")
</pallas_src>

<mosaic_0001>
module attributes {stable_mosaic.version = 11 : i64} {
  func.func @_mlp_kernel(%arg0: i32, %arg1: memref<32x784xf32, #tpu.memory_space<vmem>>, %arg2: memref<784x128xbf16, #tpu.memory_space<vmem>>, %arg3: memref<1x128xf32, #tpu.memory_space<vmem>>, %arg4: memref<128x128xbf16, #tpu.memory_space<vmem>>, %arg5: memref<1x128xf32, #tpu.memory_space<vmem>>, %arg6: memref<32x128xbf16, #tpu.memory_space<vmem>>) attributes {dimension_semantics = [#tpu.dimension_semantics<parallel>], iteration_bounds = array<i64: 2>, scalar_prefetch = 0 : i64, scratch_operands = 0 : i64, tpu.core_type = #tpu.core_type<tc>, window_params = [{transform_indices = @transform_0, window_bounds = array<i64: 32, 784>}, {pipeline_mode = #tpu.pipeline_mode<synchronous>, transform_indices = @transform_1, window_bounds = array<i64: 784, 128>}, {pipeline_mode = #tpu.pipeline_mode<synchronous>, transform_indices = @transform_2, window_bounds = array<i64: 1, 128>}, {pipeline_mode = #tpu.pipeline_mode<synchronous>, transform_indices = @transform_3, window_bounds = array<i64: 128, 128>}, {pipeline_mode = #tpu.pipeline_mode<synchronous>, transform_indices = @transform_4, window_bounds = array<i64: 1, 128>}, {transform_indices = @transform_5, window_bounds = array<i64: 32, 128>}]} {
    %c0 = arith.constant 0 : index
    %c0_0 = arith.constant 0 : index
    %0 = vector.load %arg1[%c0, %c0_0] : memref<32x784xf32, #tpu.memory_space<vmem>>, vector<32x784xf32>
    %1 = arith.truncf %0 : vector<32x784xf32> to vector<32x784xbf16>
    %c0_1 = arith.constant 0 : index
    %c0_2 = arith.constant 0 : index
    %2 = vector.load %arg2[%c0_1, %c0_2] : memref<784x128xbf16, #tpu.memory_space<vmem>>, vector<784x128xbf16>
    %cst = arith.constant dense<0.000000e+00> : vector<32x128xf32>
    %3 = tpu.matmul %1, %2, %cst {dimension_numbers = #tpu.dot_dimension_numbers<[1], [0], [0], [1], [0, 0, 1, 1], [], []>} : vector<32x784xbf16>, vector<784x128xbf16>, vector<32x128xf32> -> vector<32x128xf32>
    %c0_3 = arith.constant 0 : index
    %c0_4 = arith.constant 0 : index
    %4 = vector.load %arg3[%c0_3, %c0_4] : memref<1x128xf32, #tpu.memory_space<vmem>>, vector<1x128xf32>
    %5 = vector.broadcast %4 : vector<1x128xf32> to vector<32x128xf32>
    %6 = arith.addf %3, %5 : vector<32x128xf32>
    %cst_5 = arith.constant 0.000000e+00 : f32
    %7 = vector.broadcast %cst_5 : f32 to vector<32x128xf32>
    %8 = arith.maximumf %6, %7 : vector<32x128xf32>
    %9 = arith.truncf %8 : vector<32x128xf32> to vector<32x128xbf16>
    %c0_6 = arith.constant 0 : index
    %c0_7 = arith.constant 0 : index
    %10 = vector.load %arg4[%c0_6, %c0_7] : memref<128x128xbf16, #tpu.memory_space<vmem>>, vector<128x128xbf16>
    %cst_8 = arith.constant dense<0.000000e+00> : vector<32x128xf32>
    %11 = tpu.matmul %9, %10, %cst_8 {dimension_numbers = #tpu.dot_dimension_numbers<[1], [0], [0], [1], [0, 0, 1, 1], [], []>} : vector<32x128xbf16>, vector<128x128xbf16>, vector<32x128xf32> -> vector<32x128xf32>
    %c0_9 = arith.constant 0 : index
    %c0_10 = arith.constant 0 : index
    %12 = vector.load %arg5[%c0_9, %c0_10] : memref<1x128xf32, #tpu.memory_space<vmem>>, vector<1x128xf32>
    %13 = vector.broadcast %12 : vector<1x128xf32> to vector<32x128xf32>
    %14 = arith.addf %11, %13 : vector<32x128xf32>
    %15 = arith.truncf %14 : vector<32x128xf32> to vector<32x128xbf16>
    %c0_11 = arith.constant 0 : index
    %c0_12 = arith.constant 0 : index
    %16 = vector.load %arg6[%c0_11, %c0_12] : memref<32x128xbf16, #tpu.memory_space<vmem>>, vector<32x128xbf16>
    tpu.vector_store %arg6[%c0_11, %c0_12], %15 {strides = array<i32>} : memref<32x128xbf16, #tpu.memory_space<vmem>>, vector<32x128xbf16>,
    return
  }
  func.func @transform_0(%arg0: i32) -> (i32, i32) {
    %c0_i32 = arith.constant 0 : i32
    %c0_i32_0 = arith.constant 0 : i32
    return %arg0, %c0_i32 : i32, i32
  }
  func.func @transform_1(%arg0: i32) -> (i32, i32) {
    %c0_i32 = arith.constant 0 : i32
    %c0_i32_0 = arith.constant 0 : i32
    %c0_i32_1 = arith.constant 0 : i32
    return %c0_i32, %c0_i32_0 : i32, i32
  }
  func.func @transform_2(%arg0: i32) -> (i32, i32) {
    %c0_i32 = arith.constant 0 : i32
    %c0_i32_0 = arith.constant 0 : i32
    %c0_i32_1 = arith.constant 0 : i32
    return %c0_i32, %c0_i32_0 : i32, i32
  }
  func.func @transform_3(%arg0: i32) -> (i32, i32) {
    %c0_i32 = arith.constant 0 : i32
    %c0_i32_0 = arith.constant 0 : i32
    %c0_i32_1 = arith.constant 0 : i32
    return %c0_i32, %c0_i32_0 : i32, i32
  }
  func.func @transform_4(%arg0: i32) -> (i32, i32) {
    %c0_i32 = arith.constant 0 : i32
    %c0_i32_0 = arith.constant 0 : i32
    %c0_i32_1 = arith.constant 0 : i32
    return %c0_i32, %c0_i32_0 : i32, i32
  }
  func.func @transform_5(%arg0: i32) -> (i32, i32) {
    %c0_i32 = arith.constant 0 : i32
    %c0_i32_0 = arith.constant 0 : i32
    return %arg0, %c0_i32 : i32, i32
  }
}

</mosaic_0001>

<llo_original>
// kernel: canonical_mnist_forward.1
$region0: #{canonical_mnist_forward.1}
  #allocation0 [shape = 'u32[]', space=smem, size = 0x4, offset = 0x4, fixed_abs, tag = 'smem constant byte address 0x4 - core index']
  #allocation1 [shape = 'u32[144,128]{1,0:T(1,128)}', space=vmem, size = 0x12000, scoped, tag = 'internal scratch']
  %s0 = inlined_call_operand.vmem [shape: f32[64,784], index: 0, kind: input, shape index: {}]
  %s1 = inlined_call_operand.vmem [shape: bf16[784,128], index: 1, kind: input, shape index: {}]
  %s2 = inlined_call_operand.vmem [shape: f32[1,128], index: 2, kind: input, shape index: {}]
  %s3 = inlined_call_operand.vmem [shape: bf16[128,128], index: 3, kind: input, shape index: {}]
  %s4 = inlined_call_operand.vmem [shape: f32[1,128], index: 4, kind: input, shape index: {}]
  %s5 = inlined_call_operand.vmem [shape: bf16[64,128], index: 5, kind: output, shape index: {}]
  %s6 = sld [smem:[#allocation0]]
  $region53: #{canonical_mnist_forward.1} parent=0
    _
  %s8 = ssub.s32 1, %s6
  %s9 = scalar_select 0, %s8, %s6
  loop: start=0, step=1, limit=4
  $region2: #{canonical_mnist_forward.1} parent=0 // loop_pre_header
    _
  $region3: #{canonical_mnist_forward.1} parent=0 // loop_header
    %s11 = sphi 0, %s15
    %p12 = scmp.ge.s32.totalorder %s11, 4
    %s21 = sphi 0, %s23
    %s24 = sphi 0, %s21
    %s25 = sphi 0, %s24
    %s41 = sphi 0, %s25
    %s45 = sphi 0, %s45
    %s47 = sphi 0, %s45
    %s48 = sphi 0, %s47
    %s62 = sphi 0, %s48
    %s66 = sphi 0, %s66
    %s68 = sphi 0, %s66
    %s69 = sphi 0, %s68
    %s83 = sphi 0, %s69
    %s87 = sphi 0, %s87
    %s89 = sphi 0, %s87
    %s90 = sphi 0, %s89
    %s104 = sphi 0, %s90
    %s108 = sphi 0, %s108
    %s110 = sphi 0, %s108
    %s111 = sphi 0, %s110
    %s125 = sphi 0, %s111
    %s131 = sphi 0, %s133
    %s134 = sphi 0, %s131
    %s135 = sphi 0, %s134
    %s151 = sphi 0, %s135
  $region4: #{canonical_mnist_forward.1} parent=0 // loop_header_branch
    %14 = sbr.rel (%p12) target = $region8
  $region5: #{canonical_mnist_forward.1} parent=0 // loop_body
    %s16 = ssub.s32 %s11, 1
    %s17 = ssub.s32 %s11, 2
    %s18 = sadd.s32 %s11, 1
    %s19 = ssub.s32 %s11, %s18
    %p20 = scmp.eq.s32.totalorder %s19, 0
    %s22 = sadd.s32 %s21, 1
    %s23 = scalar_select %p20, %s21, %s22
    %p26 = pneg %p20
    %p27 = scmp.eq.s32.totalorder %s11, 1
    %p28 = por %p26, %p27
    %p29 = scmp.ne.s32.totalorder %s21, %s24
    %p30 = scmp.eq.s32.totalorder %s11, 0
    %p31 = por %p29, %p30
    %p32 = scmp.ne.s32.totalorder %s21, %s24
    %p33 = scmp.eq.s32.totalorder %s16, 1
    %p34 = por %p32, %p33
    %p35 = scmp.ne.s32.totalorder %s24, %s25
    %p36 = scmp.eq.s32.totalorder %s16, 0
    %p37 = por %p35, %p36
    %p38 = scmp.ne.s32.totalorder %s24, %s25
    %p39 = scmp.eq.s32.totalorder %s17, 1
    %p40 = por %p38, %p39
    %p42 = scmp.ne.s32.totalorder %s25, %s41
    %p43 = scmp.eq.s32.totalorder %s17, 0
    %p44 = por %p42, %p43
    %s46 = sadd.s32 %s45, 1
    %p49 = scmp.eq.s32.totalorder %s11, 1
    %p50 = scmp.ne.s32.totalorder %s45, %s47
    %p51 = scmp.eq.s32.totalorder %s11, 0
    %p52 = por %p50, %p51
    %p53 = scmp.ne.s32.totalorder %s45, %s47
    %p54 = scmp.eq.s32.totalorder %s16, 1
    %p55 = por %p53, %p54
    %p56 = scmp.ne.s32.totalorder %s47, %s48
    %p57 = scmp.eq.s32.totalorder %s16, 0
    %p58 = por %p56, %p57
    %p59 = scmp.ne.s32.totalorder %s47, %s48
    %p60 = scmp.eq.s32.totalorder %s17, 1
    %p61 = por %p59, %p60
    %p63 = scmp.ne.s32.totalorder %s48, %s62
    %p64 = scmp.eq.s32.totalorder %s17, 0
    %p65 = por %p63, %p64
    %s67 = sadd.s32 %s66, 1
    %p70 = scmp.eq.s32.totalorder %s11, 1
    %p71 = scmp.ne.s32.totalorder %s66, %s68
    %p72 = scmp.eq.s32.totalorder %s11, 0
    %p73 = por %p71, %p72
    %p74 = scmp.ne.s32.totalorder %s66, %s68
    %p75 = scmp.eq.s32.totalorder %s16, 1
    %p76 = por %p74, %p75
    %p77 = scmp.ne.s32.totalorder %s68, %s69
    %p78 = scmp.eq.s32.totalorder %s16, 0
    %p79 = por %p77, %p78
    %p80 = scmp.ne.s32.totalorder %s68, %s69
    %p81 = scmp.eq.s32.totalorder %s17, 1
    %p82 = por %p80, %p81
    %p84 = scmp.ne.s32.totalorder %s69, %s83
    %p85 = scmp.eq.s32.totalorder %s17, 0
    %p86 = por %p84, %p85
    %s88 = sadd.s32 %s87, 1
    %p91 = scmp.eq.s32.totalorder %s11, 1
    %p92 = scmp.ne.s32.totalorder %s87, %s89
    %p93 = scmp.eq.s32.totalorder %s11, 0
    %p94 = por %p92, %p93
    %p95 = scmp.ne.s32.totalorder %s87, %s89
    %p96 = scmp.eq.s32.totalorder %s16, 1
    %p97 = por %p95, %p96
    %p98 = scmp.ne.s32.totalorder %s89, %s90
    %p99 = scmp.eq.s32.totalorder %s16, 0
    %p100 = por %p98, %p99
    %p101 = scmp.ne.s32.totalorder %s89, %s90
    %p102 = scmp.eq.s32.totalorder %s17, 1
    %p103 = por %p101, %p102
    %p105 = scmp.ne.s32.totalorder %s90, %s104
    %p106 = scmp.eq.s32.totalorder %s17, 0
    %p107 = por %p105, %p106
    %s109 = sadd.s32 %s108, 1
    %p112 = scmp.eq.s32.totalorder %s11, 1
    %p113 = scmp.ne.s32.totalorder %s108, %s110
    %p114 = scmp.eq.s32.totalorder %s11, 0
    %p115 = por %p113, %p114
    %p116 = scmp.ne.s32.totalorder %s108, %s110
    %p117 = scmp.eq.s32.totalorder %s16, 1
    %p118 = por %p116, %p117
    %p119 = scmp.ne.s32.totalorder %s110, %s111
    %p120 = scmp.eq.s32.totalorder %s16, 0
    %p121 = por %p119, %p120
    %p122 = scmp.ne.s32.totalorder %s110, %s111
    %p123 = scmp.eq.s32.totalorder %s17, 1
    %p124 = por %p122, %p123
    %p126 = scmp.ne.s32.totalorder %s111, %s125
    %p127 = scmp.eq.s32.totalorder %s17, 0
    %p128 = por %p126, %p127
    %s129 = ssub.s32 %s11, %s18
    %p130 = scmp.eq.s32.totalorder %s129, 0
    %s132 = sadd.s32 %s131, 1
    %s133 = scalar_select %p130, %s131, %s132
    %p136 = pneg %p130
    %p137 = scmp.eq.s32.totalorder %s11, 1
    %p138 = por %p136, %p137
    %p139 = scmp.ne.s32.totalorder %s131, %s134
    %p140 = scmp.eq.s32.totalorder %s11, 0
    %p141 = por %p139, %p140
    %p142 = scmp.ne.s32.totalorder %s131, %s134
    %p143 = scmp.eq.s32.totalorder %s16, 1
    %p144 = por %p142, %p143
    %p145 = scmp.ne.s32.totalorder %s134, %s135
    %p146 = scmp.eq.s32.totalorder %s16, 0
    %p147 = por %p145, %p146
    %p148 = scmp.ne.s32.totalorder %s134, %s135
    %p149 = scmp.eq.s32.totalorder %s17, 1
    %p150 = por %p148, %p149
    %p152 = scmp.ne.s32.totalorder %s135, %s151
    %p153 = scmp.eq.s32.totalorder %s17, 0
    %p154 = por %p152, %p153
    %p155 = scmp.le.s32.totalorder 1, %s11
    %p156 = scmp.lt.s32.totalorder %s11, 3
    %p157 = pnand %p155, %p156
    %p158 = pneg %p157
    // Predicated region
    $region9: #{canonical_mnist_forward.1} parent=5 // pred_check
      _
    $region10: #{canonical_mnist_forward.1} parent=5 // pred_check_branch
      %160 = sbr.rel (%p157) target = $region12
    $region11: #{canonical_mnist_forward.1} parent=5 // pred_region
      %s161 = ssub.s32 %s11, 1
      // Predicated region
      $region13: #{canonical_mnist_forward.1} parent=11 // pred_check
        %p162 = pneg %p58
      $region14: #{canonical_mnist_forward.1} parent=11 // pred_check_branch
        %164 = sbr.rel (%p162) target = $region16
      $region15: #{canonical_mnist_forward.1} parent=11 // pred_region
        _
      $region16: #{canonical_mnist_forward.1} parent=11 // pred_fallthru
        _
      // Predicated region
      $region17: #{canonical_mnist_forward.1} parent=11 // pred_check
        %p165 = pneg %p79
      $region18: #{canonical_mnist_forward.1} parent=11 // pred_check_branch
        %167 = sbr.rel (%p165) target = $region20
      $region19: #{canonical_mnist_forward.1} parent=11 // pred_region
        _
      $region20: #{canonical_mnist_forward.1} parent=11 // pred_fallthru
        _
      // Predicated region
      $region21: #{canonical_mnist_forward.1} parent=11 // pred_check
        %p168 = pneg %p100
      $region22: #{canonical_mnist_forward.1} parent=11 // pred_check_branch
        %170 = sbr.rel (%p168) target = $region24
      $region23: #{canonical_mnist_forward.1} parent=11 // pred_region
        _
      $region24: #{canonical_mnist_forward.1} parent=11 // pred_fallthru
        _
      // Predicated region
      $region25: #{canonical_mnist_forward.1} parent=11 // pred_check
        %p171 = pneg %p121
      $region26: #{canonical_mnist_forward.1} parent=11 // pred_check_branch
        %173 = sbr.rel (%p171) target = $region28
      $region27: #{canonical_mnist_forward.1} parent=11 // pred_region
        _
      $region28: #{canonical_mnist_forward.1} parent=11 // pred_fallthru
        _
    $region12: #{canonical_mnist_forward.1} parent=5 // pred_fallthru
      _
    %p174 = scmp.lt.s32.totalorder %s11, 2
    // Predicated region
    $region29: #{canonical_mnist_forward.1} parent=5 // pred_check
      %p175 = pneg %p174
    $region30: #{canonical_mnist_forward.1} parent=5 // pred_check_branch
      %177 = sbr.rel (%p175) target = $region32
    $region31: #{canonical_mnist_forward.1} parent=5 // pred_region
      // Predicated region
      $region33: #{canonical_mnist_forward.1} parent=31 // pred_check
        %p178 = pneg %p31
      $region34: #{canonical_mnist_forward.1} parent=31 // pred_check_branch
        %180 = sbr.rel (%p178) target = $region36
      $region35: #{canonical_mnist_forward.1} parent=31 // pred_region
        %s181 = smul.u32 4, %s11
        %p182 = scmp.lt.s32.totalorder %s181, 7
        %s183 = scalar_select %p182, %s181, 7
        %s184 = smul.addr %s183, 7
        %s185 = smul.addr %s184, 8
        %s186 = scalar_lea.vmem %s0, %s185
        %s187 = smul.u32 4, %s11
      $region36: #{canonical_mnist_forward.1} parent=31 // pred_fallthru
        _
    $region32: #{canonical_mnist_forward.1} parent=5 // pred_fallthru
      _
    %p188 = scmp.le.s32.totalorder 1, %s11
    %p189 = scmp.lt.s32.totalorder %s11, 3
    %p190 = pnand %p188, %p189
    %p191 = pneg %p190
    // Predicated region
    $region37: #{canonical_mnist_forward.1} parent=5 // pred_check
      _
    $region38: #{canonical_mnist_forward.1} parent=5 // pred_check_branch
      %193 = sbr.rel (%p190) target = $region40
    $region39: #{canonical_mnist_forward.1} parent=5 // pred_region
      %s194 = ssub.s32 %s11, 1
      %s195 = smul.u32 4, %s16
      %p196 = scmp.lt.s32.totalorder %s195, 7
      %s197 = scalar_select %p196, %s195, 7
      %s198 = smul.addr %s197, 7
      %s199 = smul.addr %s198, 8
      %s200 = scalar_lea.vmem %s0, %s199
      %p201 = pneg %p37
      %p202 = pneg %p34
      %p203 = pneg %p58
      %p204 = pneg %p55
      %p205 = pneg %p79
      %p206 = pneg %p76
      %p207 = pneg %p100
      %p208 = pneg %p97
      %p209 = pneg %p121
      %p210 = pneg %p118
      %p211 = pneg %p147
      %p212 = pneg %p144
      %s213 = smul.u32 4, %s16
      %p214 = scmp.lt.s32.totalorder %s213, 7
      %s215 = scalar_select %p214, %s213, 7
      %s216 = smul.addr %s215, 4
      %s217 = scalar_lea.vmem %s5, %s216
      %s218 = smul.u32 4, %s16
      %p219 = scmp.lt.s32.totalorder %s218, 7
      %s220 = scalar_select %p219, %s218, 7
      %s221 = smul.addr %s220, 7
      %s222 = smul.addr %s221, 8
      %s223 = scalar_lea.vmem %s0, %s222
      %s224 = smul.u32 4, %s16
      %s225 = smul.u32 4, %s16
      %p226 = scmp.lt.s32.totalorder %s225, 7
      %s227 = scalar_select %p226, %s225, 7
      %s228 = smul.addr %s227, 4
      %s229 = scalar_lea.vmem %s5, %s228
      %s230 = smul.u32 4, %s16
      %v232 = vld [vmem:[%s223] sm:$0xff]
      %v233 = vld [vmem:[%s223 + $0x8] sm:$0xff]
      %v234 = vld [vmem:[%s223 + $0x10] sm:$0xff]
      %v235 = vld [vmem:[%s223 + $0x18] sm:$0xff]
      %v236 = vld [vmem:[%s223 + $0x20] sm:$0xff]
      %v237 = vld [vmem:[%s223 + $0x28] sm:$0xff]
      %v238 = vld [vmem:[%s223 + $0x30] sm:$0xff]
      %v239 = vld [vmem:[%s223 + $0x38] sm:$0xff]
      %v240 = vld [vmem:[%s223 + $0x40] sm:$0xff]
      %v241 = vld [vmem:[%s223 + $0x48] sm:$0xff]
      %v242 = vld [vmem:[%s223 + $0x50] sm:$0xff]
      %v243 = vld [vmem:[%s223 + $0x58] sm:$0xff]
      %v244 = vld [vmem:[%s223 + $0x60] sm:$0xff]
      %v245 = vld [vmem:[%s223 + $0x68] sm:$0xff]
      %v246 = vld [vmem:[%s223 + $0x70] sm:$0xff]
      %v247 = vld [vmem:[%s223 + $0x78] sm:$0xff]
      %v248 = vld [vmem:[%s223 + $0x80] sm:$0xff]
      %v249 = vld [vmem:[%s223 + $0x88] sm:$0xff]
      %v250 = vld [vmem:[%s223 + $0x90] sm:$0xff]
      %v251 = vld [vmem:[%s223 + $0x98] sm:$0xff]
      %v252 = vld [vmem:[%s223 + $0xa0] sm:$0xff]
      %v253 = vld [vmem:[%s223 + $0xa8] sm:$0xff]
      %v254 = vld [vmem:[%s223 + $0xb0] sm:$0xff]
      %v255 = vld [vmem:[%s223 + $0xb8] sm:$0xff]
      %v256 = vld [vmem:[%s223 + $0xc0] sm:$0xff]
      %v257 = vld [vmem:[%s223 + $0xc8] sm:$0xff]
      %v258 = vld [vmem:[%s223 + $0xd0] sm:$0xff]
      %v259 = vld [vmem:[%s223 + $0xd8] sm:$0xff]
      %v260 = vpack.c.bf16 %v239, %v232
      %v261 = vpack.c.bf16 %v240, %v233
      %v262 = vpack.c.bf16 %v241, %v234
      %v263 = vpack.c.bf16 %v242, %v235
      %v264 = vpack.c.bf16 %v243, %v236
      %v265 = vpack.c.bf16 %v244, %v237
      %v266 = vpack.c.bf16 %v245, %v238
      %v267 = vpack.c.bf16 %v253, %v246
      %v268 = vpack.c.bf16 %v254, %v247
      %v269 = vpack.c.bf16 %v255, %v248
      %v270 = vpack.c.bf16 %v256, %v249
      %v271 = vpack.c.bf16 %v257, %v250
      %v272 = vpack.c.bf16 %v258, %v251
      %v273 = vpack.c.bf16 %v259, %v252
      %v274 = vld [vmem:[%s1] sm:$0xf]
      %v275 = vld [vmem:[%s1 + $0x4] sm:$0xf]
      %v276 = vld [vmem:[%s1 + $0x8] sm:$0xf]
      %v277 = vld [vmem:[%s1 + $0xc] sm:$0xf]
      %v278 = vld [vmem:[%s1 + $0x10] sm:$0xf]
      %v279 = vld [vmem:[%s1 + $0x14] sm:$0xf]
      %v280 = vld [vmem:[%s1 + $0x18] sm:$0xf]
      %v281 = vld [vmem:[%s1 + $0x1c] sm:$0xf]
      %v282 = vld [vmem:[%s1 + $0x20] sm:$0xf]
      %v283 = vld [vmem:[%s1 + $0x24] sm:$0xf]
      %v284 = vld [vmem:[%s1 + $0x28] sm:$0xf]
      %v285 = vld [vmem:[%s1 + $0x2c] sm:$0xf]
      %v286 = vld [vmem:[%s1 + $0x30] sm:$0xf]
      %v287 = vld [vmem:[%s1 + $0x34] sm:$0xf]
      %v288 = vld [vmem:[%s1 + $0x38] sm:$0xf]
      %v289 = vld [vmem:[%s1 + $0x3c] sm:$0xf]
      %v290 = vld [vmem:[%s1 + $0x40] sm:$0xf]
      %v291 = vld [vmem:[%s1 + $0x44] sm:$0xf]
      %v292 = vld [vmem:[%s1 + $0x48] sm:$0xf]
      %v293 = vld [vmem:[%s1 + $0x4c] sm:$0xf]
      %v294 = vld [vmem:[%s1 + $0x50] sm:$0xf]
      %v295 = vld [vmem:[%s1 + $0x54] sm:$0xf]
      %v296 = vld [vmem:[%s1 + $0x58] sm:$0xf]
      %v297 = vld [vmem:[%s1 + $0x5c] sm:$0xf]
      %v298 = vld [vmem:[%s1 + $0x60] sm:$0xf]
      %v299 = vld [vmem:[%s1 + $0x64] sm:$0xf]
      %v300 = vld [vmem:[%s1 + $0x68] sm:$0xf]
      %v301 = vld [vmem:[%s1 + $0x6c] sm:$0xf]
      %v302 = vld [vmem:[%s1 + $0x70] sm:$0xf]
      %v303 = vld [vmem:[%s1 + $0x74] sm:$0xf]
      %v304 = vld [vmem:[%s1 + $0x78] sm:$0xf]
      %v305 = vld [vmem:[%s1 + $0x7c] sm:$0xf]
      %v306 = vld [vmem:[%s1 + $0x80] sm:$0xf]
      %v307 = vld [vmem:[%s1 + $0x84] sm:$0xf]
      %v308 = vld [vmem:[%s1 + $0x88] sm:$0xf]
      %v309 = vld [vmem:[%s1 + $0x8c] sm:$0xf]
      %v310 = vld [vmem:[%s1 + $0x90] sm:$0xf]
      %v311 = vld [vmem:[%s1 + $0x94] sm:$0xf]
      %v312 = vld [vmem:[%s1 + $0x98] sm:$0xf]
      %v313 = vld [vmem:[%s1 + $0x9c] sm:$0xf]
      %v314 = vld [vmem:[%s1 + $0xa0] sm:$0xf]
      %v315 = vld [vmem:[%s1 + $0xa4] sm:$0xf]
      %v316 = vld [vmem:[%s1 + $0xa8] sm:$0xf]
      %v317 = vld [vmem:[%s1 + $0xac] sm:$0xf]
      %v318 = vld [vmem:[%s1 + $0xb0] sm:$0xf]
      %v319 = vld [vmem:[%s1 + $0xb4] sm:$0xf]
      %v320 = vld [vmem:[%s1 + $0xb8] sm:$0xf]
      %v321 = vld [vmem:[%s1 + $0xbc] sm:$0xf]
      %v322 = vld [vmem:[%s1 + $0xc0] sm:$0xf]
      %v323 = vld [vmem:[%s1 + $0xc4] sm:$0xf]
      %v324 = vld [vmem:[%s1 + $0xc8] sm:$0xf]
      %v325 = vld [vmem:[%s1 + $0xcc] sm:$0xf]
      %v326 = vld [vmem:[%s1 + $0xd0] sm:$0xf]
      %v327 = vld [vmem:[%s1 + $0xd4] sm:$0xf]
      %v328 = vld [vmem:[%s1 + $0xd8] sm:$0xf]
      %v329 = vld [vmem:[%s1 + $0xdc] sm:$0xf]
      %v330 = vld [vmem:[%s1 + $0xe0] sm:$0xf]
      %v331 = vld [vmem:[%s1 + $0xe4] sm:$0xf]
      %v332 = vld [vmem:[%s1 + $0xe8] sm:$0xf]
      %v333 = vld [vmem:[%s1 + $0xec] sm:$0xf]
      %v334 = vld [vmem:[%s1 + $0xf0] sm:$0xf]
      %v335 = vld [vmem:[%s1 + $0xf4] sm:$0xf]
      %v336 = vld [vmem:[%s1 + $0xf8] sm:$0xf]
      %v337 = vld [vmem:[%s1 + $0xfc] sm:$0xf]
      %v338 = vld [vmem:[%s1 + $0x100] sm:$0xf]
      %v339 = vld [vmem:[%s1 + $0x104] sm:$0xf]
      %v340 = vld [vmem:[%s1 + $0x108] sm:$0xf]
      %v341 = vld [vmem:[%s1 + $0x10c] sm:$0xf]
      %v342 = vld [vmem:[%s1 + $0x110] sm:$0xf]
      %v343 = vld [vmem:[%s1 + $0x114] sm:$0xf]
      %v344 = vld [vmem:[%s1 + $0x118] sm:$0xf]
      %v345 = vld [vmem:[%s1 + $0x11c] sm:$0xf]
      %v346 = vld [vmem:[%s1 + $0x120] sm:$0xf]
      %v347 = vld [vmem:[%s1 + $0x124] sm:$0xf]
      %v348 = vld [vmem:[%s1 + $0x128] sm:$0xf]
      %v349 = vld [vmem:[%s1 + $0x12c] sm:$0xf]
      %v350 = vld [vmem:[%s1 + $0x130] sm:$0xf]
      %v351 = vld [vmem:[%s1 + $0x134] sm:$0xf]
      %v352 = vld [vmem:[%s1 + $0x138] sm:$0xf]
      %v353 = vld [vmem:[%s1 + $0x13c] sm:$0xf]
      %v354 = vld [vmem:[%s1 + $0x140] sm:$0xf]
      %v355 = vld [vmem:[%s1 + $0x144] sm:$0xf]
      %v356 = vld [vmem:[%s1 + $0x148] sm:$0xf]
      %v357 = vld [vmem:[%s1 + $0x14c] sm:$0xf]
      %v358 = vld [vmem:[%s1 + $0x150] sm:$0xf]
      %v359 = vld [vmem:[%s1 + $0x154] sm:$0xf]
      %v360 = vld [vmem:[%s1 + $0x158] sm:$0xf]
      %v361 = vld [vmem:[%s1 + $0x15c] sm:$0xf]
      %v362 = vld [vmem:[%s1 + $0x160] sm:$0xf]
      %v363 = vld [vmem:[%s1 + $0x164] sm:$0xf]
      %v364 = vld [vmem:[%s1 + $0x168] sm:$0xf]
      %v365 = vld [vmem:[%s1 + $0x16c] sm:$0xf]
      %v366 = vld [vmem:[%s1 + $0x170] sm:$0xf]
      %v367 = vld [vmem:[%s1 + $0x174] sm:$0xf]
      %v368 = vld [vmem:[%s1 + $0x178] sm:$0xf]
      %v369 = vld [vmem:[%s1 + $0x17c] sm:$0xf]
      %v370 = vld [vmem:[%s1 + $0x180] sm:$0xf]
      %v371 = vld [vmem:[%s1 + $0x184] sm:$0xf]
      %v372 = vld [vmem:[%s2] sm:$0x1]
      %v374 = vlaneseq
      %v375 = vshrl.u32 %v374, 7
      %v376 = vsub.s32 0, %v375
      %v377 = vrot.slane %v372, %v376
      %v477 = vunpack.c.l.b16 %v274
      %v478 = vunpack.c.l.b16 %v275
      %v479 = vunpack.c.l.b16 %v276
      %v480 = vunpack.c.l.b16 %v277
      %v481 = vunpack.c.l.b16 %v278
      %v482 = vunpack.c.l.b16 %v279
      %v483 = vunpack.c.l.b16 %v280
      %v484 = vunpack.c.l.b16 %v281
      %v485 = vunpack.c.l.b16 %v282
      %v486 = vunpack.c.l.b16 %v283
      %v487 = vunpack.c.l.b16 %v284
      %v488 = vunpack.c.l.b16 %v285
      %v489 = vunpack.c.l.b16 %v286
      %v490 = vunpack.c.l.b16 %v287
      %v491 = vunpack.c.l.b16 %v288
      %v492 = vunpack.c.l.b16 %v289
      %v493 = vunpack.c.l.b16 %v290
      %v494 = vunpack.c.l.b16 %v291
      %v495 = vunpack.c.l.b16 %v292
      %v496 = vunpack.c.l.b16 %v293
      %v497 = vunpack.c.l.b16 %v294
      %v498 = vunpack.c.l.b16 %v295
      %v499 = vunpack.c.l.b16 %v296
      %v500 = vunpack.c.l.b16 %v297
      %v501 = vunpack.c.l.b16 %v298
      %v502 = vunpack.c.l.b16 %v299
      %v503 = vunpack.c.l.b16 %v300
      %v504 = vunpack.c.l.b16 %v301
      %v505 = vunpack.c.l.b16 %v302
      %v506 = vunpack.c.l.b16 %v303
      %v507 = vunpack.c.l.b16 %v304
      %v508 = vunpack.c.l.b16 %v305
      %v509 = vunpack.c.l.b16 %v306
      %v510 = vunpack.c.l.b16 %v307
      %v511 = vunpack.c.l.b16 %v308
      %v512 = vunpack.c.l.b16 %v309
      %v513 = vunpack.c.l.b16 %v310
      %v514 = vunpack.c.l.b16 %v311
      %v515 = vunpack.c.l.b16 %v312
      %v516 = vunpack.c.l.b16 %v313
      %v517 = vunpack.c.l.b16 %v314
      %v518 = vunpack.c.l.b16 %v315
      %v519 = vunpack.c.l.b16 %v316
      %v520 = vunpack.c.l.b16 %v317
      %v521 = vunpack.c.l.b16 %v318
      %v522 = vunpack.c.l.b16 %v319
      %v523 = vunpack.c.l.b16 %v320
      %v524 = vunpack.c.l.b16 %v321
      %v525 = vunpack.c.l.b16 %v322
      %v526 = vunpack.c.l.b16 %v323
      %v527 = vunpack.c.l.b16 %v324
      %v528 = vunpack.c.l.b16 %v325
      %v529 = vunpack.c.l.b16 %v326
      %v530 = vunpack.c.l.b16 %v327
      %v531 = vunpack.c.l.b16 %v328
      %v532 = vunpack.c.l.b16 %v329
      %v533 = vunpack.c.l.b16 %v330
      %v534 = vunpack.c.l.b16 %v331
      %v535 = vunpack.c.l.b16 %v332
      %v536 = vunpack.c.l.b16 %v333
      %v537 = vunpack.c.l.b16 %v334
      %v538 = vunpack.c.l.b16 %v335
      %v539 = vunpack.c.l.b16 %v336
      %v540 = vunpack.c.l.b16 %v337
      %v541 = vunpack.c.l.b16 %v338
      %v542 = vunpack.c.l.b16 %v339
      %v543 = vunpack.c.l.b16 %v340
      %v544 = vunpack.c.l.b16 %v341
      %v545 = vunpack.c.l.b16 %v342
      %v546 = vunpack.c.l.b16 %v343
      %v547 = vunpack.c.l.b16 %v344
      %v548 = vunpack.c.l.b16 %v345
      %v549 = vunpack.c.l.b16 %v346
      %v550 = vunpack.c.l.b16 %v347
      %v551 = vunpack.c.l.b16 %v348
      %v552 = vunpack.c.l.b16 %v349
      %v553 = vunpack.c.l.b16 %v350
      %v554 = vunpack.c.l.b16 %v351
      %v555 = vunpack.c.l.b16 %v352
      %v556 = vunpack.c.l.b16 %v353
      %v557 = vunpack.c.l.b16 %v354
      %v558 = vunpack.c.l.b16 %v355
      %v559 = vunpack.c.l.b16 %v356
      %v560 = vunpack.c.l.b16 %v357
      %v561 = vunpack.c.l.b16 %v358
      %v562 = vunpack.c.l.b16 %v359
      %v563 = vunpack.c.l.b16 %v360
      %v564 = vunpack.c.l.b16 %v361
      %v565 = vunpack.c.l.b16 %v362
      %v566 = vunpack.c.l.b16 %v363
      %v567 = vunpack.c.l.b16 %v364
      %v568 = vunpack.c.l.b16 %v365
      %v569 = vunpack.c.l.b16 %v366
      %v570 = vunpack.c.l.b16 %v367
      %v571 = vunpack.c.l.b16 %v368
      %v572 = vunpack.c.l.b16 %v369
      %v573 = vunpack.c.l.b16 %v370
      %v574 = vunpack.c.l.b16 %v371
      %v575 = vpack.c.b16 %v478, %v477
      %v576 = vpack.c.b16 %v480, %v479
      %v577 = vpack.c.b16 %v482, %v481
      %v578 = vpack.c.b16 %v484, %v483
      %v579 = vpack.c.b16 %v486, %v485
      %v580 = vpack.c.b16 %v488, %v487
      %v581 = vpack.c.b16 %v490, %v489
      %v582 = vpack.c.b16 %v492, %v491
      %v583 = vpack.c.b16 %v494, %v493
      %v584 = vpack.c.b16 %v496, %v495
      %v585 = vpack.c.b16 %v498, %v497
      %v586 = vpack.c.b16 %v500, %v499
      %v587 = vpack.c.b16 %v502, %v501
      %v588 = vpack.c.b16 %v504, %v503
      %v589 = vpack.c.b16 %v506, %v505
      %v590 = vpack.c.b16 %v508, %v507
      %v591 = vpack.c.b16 %v510, %v509
      %v592 = vpack.c.b16 %v512, %v511
      %v593 = vpack.c.b16 %v514, %v513
      %v594 = vpack.c.b16 %v516, %v515
      %v595 = vpack.c.b16 %v518, %v517
      %v596 = vpack.c.b16 %v520, %v519
      %v597 = vpack.c.b16 %v522, %v521
      %v598 = vpack.c.b16 %v524, %v523
      %v599 = vpack.c.b16 %v526, %v525
      %v600 = vpack.c.b16 %v528, %v527
      %v601 = vpack.c.b16 %v530, %v529
      %v602 = vpack.c.b16 %v532, %v531
      %v603 = vpack.c.b16 %v534, %v533
      %v604 = vpack.c.b16 %v536, %v535
      %v605 = vpack.c.b16 %v538, %v537
      %v606 = vpack.c.b16 %v540, %v539
      %v607 = vpack.c.b16 %v542, %v541
      %v608 = vpack.c.b16 %v544, %v543
      %v609 = vpack.c.b16 %v546, %v545
      %v610 = vpack.c.b16 %v548, %v547
      %v611 = vpack.c.b16 %v550, %v549
      %v612 = vpack.c.b16 %v552, %v551
      %v613 = vpack.c.b16 %v554, %v553
      %v614 = vpack.c.b16 %v556, %v555
      %v615 = vpack.c.b16 %v558, %v557
      %v616 = vpack.c.b16 %v560, %v559
      %v617 = vpack.c.b16 %v562, %v561
      %v618 = vpack.c.b16 %v564, %v563
      %v619 = vpack.c.b16 %v566, %v565
      %v620 = vpack.c.b16 %v568, %v567
      %v621 = vpack.c.b16 %v570, %v569
      %v622 = vpack.c.b16 %v572, %v571
      %v623 = vpack.c.b16 %v574, %v573
      %vm673 = vcmask 130048
      %v675 = vsel %vm673, %v266, 0
      %v678 = vsel %vm673, %v273, 0
      %680 = vmatprep.subr.bf16.mxu0 0
      %681 = vmatpush1.bf16.msra.mxu0 %v575
      %682 = vmatprep.subr.bf16.mxu0 0
      %683 = vmatpush1.bf16.msra.mxu0 %v576
      %684 = vmatprep.subr.bf16.mxu0 0
      %685 = vmatpush1.bf16.msra.mxu0 %v577
      %686 = vmatprep.subr.bf16.mxu0 0
      %687 = vmatpush1.bf16.msra.mxu0 %v578
      %688 = vmatprep.subr.bf16.mxu0 0
      %689 = vmatpush1.bf16.msra.mxu0 %v579
      %690 = vmatprep.subr.bf16.mxu0 0
      %691 = vmatpush1.bf16.msra.mxu0 %v580
      %692 = vmatprep.subr.bf16.mxu0 0
      %693 = vmatpush1.bf16.msra.mxu0 %v581
      %694 = vmatprep.subr.bf16.mxu0 0
      %695 = vmatpush1.bf16.msra.mxu0 %v582
      %696 = vmatprep.subr.bf16.mxu0 0
      %697 = vmatpush1.bf16.msra.mxu0 %v583
      %698 = vmatprep.subr.bf16.mxu0 0
      %699 = vmatpush1.bf16.msra.mxu0 %v584
      %700 = vmatprep.subr.bf16.mxu0 0
      %701 = vmatpush1.bf16.msra.mxu0 %v585
      %702 = vmatprep.subr.bf16.mxu0 0
      %703 = vmatpush1.bf16.msra.mxu0 %v586
      %704 = vmatprep.subr.bf16.mxu0 0
      %705 = vmatpush1.bf16.msra.mxu0 %v587
      %706 = vmatprep.subr.bf16.mxu0 0
      %707 = vmatpush1.bf16.msra.mxu0 %v588
      %708 = vmatprep.subr.bf16.mxu0 0
      %709 = vmatpush1.bf16.msra.mxu0 %v589
      %710 = vmatprep.subr.bf16.mxu0 0
      %711 = vmatpush1.bf16.msra.mxu0 %v590
      %712 = vmatprep.mubr.bf16.mxu0 %v261
      %713 = vmatmul.mubr.bf16.gmra.mrb[0].mxu0 %v260
      %v714 = vpop.f32.mrb[0].mxu0
      %v715 = vadd.f32 %v377, %v714
      %v716 = vpop.f32.mrb[0].mxu0
      %v717 = vpop.f32.mrb[0].mxu0
      %v718 = vadd.f32 %v377, %v717
      %v719 = vpop.f32.mrb[0].mxu0
      %720 = vmatprep.mubr.bf16.mxu0 %v268
      %721 = vmatmul.mubr.bf16.gmra.mrb[0].mxu0 %v267
      %v722 = vpop.f32.mrb[0].mxu0
      %v723 = vadd.f32 %v377, %v722
      %v724 = vpop.f32.mrb[0].mxu0
      %v725 = vpop.f32.mrb[0].mxu0
      %v726 = vadd.f32 %v377, %v725
      %v727 = vpop.f32.mrb[0].mxu0
      %728 = vdwg.mxu0
      %729 = vmatprep.subr.bf16.mxu0 0
      %730 = vmatpush1.bf16.msra.mxu0 %v591
      %731 = vmatprep.subr.bf16.mxu0 0
      %732 = vmatpush1.bf16.msra.mxu0 %v592
      %733 = vmatprep.subr.bf16.mxu0 0
      %734 = vmatpush1.bf16.msra.mxu0 %v593
      %735 = vmatprep.subr.bf16.mxu0 0
      %736 = vmatpush1.bf16.msra.mxu0 %v594
      %737 = vmatprep.subr.bf16.mxu0 0
      %738 = vmatpush1.bf16.msra.mxu0 %v595
      %739 = vmatprep.subr.bf16.mxu0 0
      %740 = vmatpush1.bf16.msra.mxu0 %v596
      %741 = vmatprep.subr.bf16.mxu0 0
      %742 = vmatpush1.bf16.msra.mxu0 %v597
      %743 = vmatprep.subr.bf16.mxu0 0
      %744 = vmatpush1.bf16.msra.mxu0 %v598
      %745 = vmatprep.subr.bf16.mxu0 0
      %746 = vmatpush1.bf16.msra.mxu0 %v599
      %747 = vmatprep.subr.bf16.mxu0 0
      %748 = vmatpush1.bf16.msra.mxu0 %v600
      %749 = vmatprep.subr.bf16.mxu0 0
      %750 = vmatpush1.bf16.msra.mxu0 %v601
      %751 = vmatprep.subr.bf16.mxu0 0
      %752 = vmatpush1.bf16.msra.mxu0 %v602
      %753 = vmatprep.subr.bf16.mxu0 0
      %754 = vmatpush1.bf16.msra.mxu0 %v603
      %755 = vmatprep.subr.bf16.mxu0 0
      %756 = vmatpush1.bf16.msra.mxu0 %v604
      %757 = vmatprep.subr.bf16.mxu0 0
      %758 = vmatpush1.bf16.msra.mxu0 %v605
      %759 = vmatprep.subr.bf16.mxu0 0
      %760 = vmatpush1.bf16.msra.mxu0 %v606
      %761 = vmatprep.mubr.bf16.mxu0 %v263
      %762 = vmatmul.mubr.bf16.gmra.mrb[0].mxu0 %v262
      %v763 = vpop.f32.mrb[0].mxu0
      %v764 = vadd.f32 %v715, %v763
      %v765 = vpop.f32.mrb[0].mxu0
      %v766 = vpop.f32.mrb[0].mxu0
      %v767 = vadd.f32 %v718, %v766
      %v768 = vpop.f32.mrb[0].mxu0
      %769 = vmatprep.mubr.bf16.mxu0 %v270
      %770 = vmatmul.mubr.bf16.gmra.mrb[0].mxu0 %v269
      %v771 = vpop.f32.mrb[0].mxu0
      %v772 = vadd.f32 %v723, %v771
      %v773 = vpop.f32.mrb[0].mxu0
      %v774 = vpop.f32.mrb[0].mxu0
      %v775 = vadd.f32 %v726, %v774
      %v776 = vpop.f32.mrb[0].mxu0
      %777 = vdwg.mxu0
      %778 = vmatprep.subr.bf16.mxu0 0
      %779 = vmatpush1.bf16.msra.mxu0 %v607
      %780 = vmatprep.subr.bf16.mxu0 0
      %781 = vmatpush1.bf16.msra.mxu0 %v608
      %782 = vmatprep.subr.bf16.mxu0 0
      %783 = vmatpush1.bf16.msra.mxu0 %v609
      %784 = vmatprep.subr.bf16.mxu0 0
      %785 = vmatpush1.bf16.msra.mxu0 %v610
      %786 = vmatprep.subr.bf16.mxu0 0
      %787 = vmatpush1.bf16.msra.mxu0 %v611
      %788 = vmatprep.subr.bf16.mxu0 0
      %789 = vmatpush1.bf16.msra.mxu0 %v612
      %790 = vmatprep.subr.bf16.mxu0 0
      %791 = vmatpush1.bf16.msra.mxu0 %v613
      %792 = vmatprep.subr.bf16.mxu0 0
      %793 = vmatpush1.bf16.msra.mxu0 %v614
      %794 = vmatprep.subr.bf16.mxu0 0
      %795 = vmatpush1.bf16.msra.mxu0 %v615
      %796 = vmatprep.subr.bf16.mxu0 0
      %797 = vmatpush1.bf16.msra.mxu0 %v616
      %798 = vmatprep.subr.bf16.mxu0 0
      %799 = vmatpush1.bf16.msra.mxu0 %v617
      %800 = vmatprep.subr.bf16.mxu0 0
      %801 = vmatpush1.bf16.msra.mxu0 %v618
      %802 = vmatprep.subr.bf16.mxu0 0
      %803 = vmatpush1.bf16.msra.mxu0 %v619
      %804 = vmatprep.subr.bf16.mxu0 0
      %805 = vmatpush1.bf16.msra.mxu0 %v620
      %806 = vmatprep.subr.bf16.mxu0 0
      %807 = vmatpush1.bf16.msra.mxu0 %v621
      %808 = vmatprep.subr.bf16.mxu0 0
      %809 = vmatpush1.bf16.msra.mxu0 %v622
      %810 = vmatprep.mubr.bf16.mxu0 %v265
      %811 = vmatmul.mubr.bf16.gmra.mrb[0].mxu0 %v264
      %v812 = vpop.f32.mrb[0].mxu0
      %v813 = vadd.f32 %v764, %v812
      %v814 = vpop.f32.mrb[0].mxu0
      %v815 = vpop.f32.mrb[0].mxu0
      %v816 = vadd.f32 %v767, %v815
      %v817 = vpop.f32.mrb[0].mxu0
      %818 = vmatprep.mubr.bf16.mxu0 %v272
      %819 = vmatmul.mubr.bf16.gmra.mrb[0].mxu0 %v271
      %v820 = vpop.f32.mrb[0].mxu0
      %v821 = vadd.f32 %v772, %v820
      %v822 = vpop.f32.mrb[0].mxu0
      %v823 = vpop.f32.mrb[0].mxu0
      %v824 = vadd.f32 %v775, %v823
      %v825 = vpop.f32.mrb[0].mxu0
      %826 = vdwg.mxu0
      %827 = vmatprep.subr.bf16.mxu0 0
      %828 = vmatpush1.bf16.msra.mxu0 %v623
      %829 = vmatprep.subr.bf16.mxu0 0
      %830 = vmatpush1.bf16.msra.mxu0 0
      %831 = vmatprep.subr.bf16.mxu0 0
      %832 = vmatpush1.bf16.msra.mxu0 0
      %833 = vmatprep.subr.bf16.mxu0 0
      %834 = vmatpush1.bf16.msra.mxu0 0
      %835 = vmatprep.subr.bf16.mxu0 0
      %836 = vmatpush1.bf16.msra.mxu0 0
      %837 = vmatprep.subr.bf16.mxu0 0
      %838 = vmatpush1.bf16.msra.mxu0 0
      %839 = vmatprep.subr.bf16.mxu0 0
      %840 = vmatpush1.bf16.msra.mxu0 0
      %841 = vmatprep.subr.bf16.mxu0 0
      %842 = vmatpush1.bf16.msra.mxu0 0
      %843 = vmatprep.subr.bf16.mxu0 0
      %844 = vmatpush1.bf16.msra.mxu0 0
      %845 = vmatprep.subr.bf16.mxu0 0
      %846 = vmatpush1.bf16.msra.mxu0 0
      %847 = vmatprep.subr.bf16.mxu0 0
      %848 = vmatpush1.bf16.msra.mxu0 0
      %849 = vmatprep.subr.bf16.mxu0 0
      %850 = vmatpush1.bf16.msra.mxu0 0
      %851 = vmatprep.subr.bf16.mxu0 0
      %852 = vmatpush1.bf16.msra.mxu0 0
      %853 = vmatprep.subr.bf16.mxu0 0
      %854 = vmatpush1.bf16.msra.mxu0 0
      %855 = vmatprep.subr.bf16.mxu0 0
      %856 = vmatpush1.bf16.msra.mxu0 0
      %857 = vmatprep.subr.bf16.mxu0 0
      %858 = vmatpush1.bf16.msra.mxu0 0
      %859 = vmatprep.mubr.bf16.mxu0 0
      %860 = vmatmul.mubr.bf16.gmra.mrb[0].mxu0 %v675
      %v861 = vpop.f32.mrb[0].mxu0
      %v862 = vadd.f32 %v813, %v861
      %v863 = vpop.f32.mrb[0].mxu0
      %v864 = vpop.f32.mrb[0].mxu0
      %v865 = vadd.f32 %v816, %v864
      %v866 = vpop.f32.mrb[0].mxu0
      %867 = vmatprep.mubr.bf16.mxu0 0
      %868 = vmatmul.mubr.bf16.gmra.mrb[0].mxu0 %v678
      %v869 = vpop.f32.mrb[0].mxu0
      %v870 = vadd.f32 %v821, %v869
      %v871 = vpop.f32.mrb[0].mxu0
      %v872 = vpop.f32.mrb[0].mxu0
      %v873 = vadd.f32 %v824, %v872
      %v874 = vpop.f32.mrb[0].mxu0
      %875 = vdwg.mxu0
      %v876 = vmax.f32 %v862, 0.0
      %v877 = vmax.f32 %v865, 0.0
      %v878 = vmax.f32 %v870, 0.0
      %v879 = vmax.f32 %v873, 0.0
      %v880 = vpack.c.bf16 %v877, %v876
      %v881 = vpack.c.bf16 %v879, %v878
      %v882 = vld [vmem:[%s3] sm:$0xf]
      %v883 = vld [vmem:[%s3 + $0x4] sm:$0xf]
      %v884 = vld [vmem:[%s3 + $0x8] sm:$0xf]
      %v885 = vld [vmem:[%s3 + $0xc] sm:$0xf]
      %v886 = vld [vmem:[%s3 + $0x10] sm:$0xf]
      %v887 = vld [vmem:[%s3 + $0x14] sm:$0xf]
      %v888 = vld [vmem:[%s3 + $0x18] sm:$0xf]
      %v889 = vld [vmem:[%s3 + $0x1c] sm:$0xf]
      %v890 = vld [vmem:[%s3 + $0x20] sm:$0xf]
      %v891 = vld [vmem:[%s3 + $0x24] sm:$0xf]
      %v892 = vld [vmem:[%s3 + $0x28] sm:$0xf]
      %v893 = vld [vmem:[%s3 + $0x2c] sm:$0xf]
      %v894 = vld [vmem:[%s3 + $0x30] sm:$0xf]
      %v895 = vld [vmem:[%s3 + $0x34] sm:$0xf]
      %v896 = vld [vmem:[%s3 + $0x38] sm:$0xf]
      %v897 = vld [vmem:[%s3 + $0x3c] sm:$0xf]
      %v898 = vld [vmem:[%s4] sm:$0x1]
      %v900 = vlaneseq
      %v901 = vshrl.u32 %v900, 7
      %v902 = vsub.s32 0, %v901
      %v903 = vrot.slane %v898, %v902
      %v921 = vunpack.c.l.b16 %v882
      %v922 = vunpack.c.l.b16 %v883
      %v923 = vunpack.c.l.b16 %v884
      %v924 = vunpack.c.l.b16 %v885
      %v925 = vunpack.c.l.b16 %v886
      %v926 = vunpack.c.l.b16 %v887
      %v927 = vunpack.c.l.b16 %v888
      %v928 = vunpack.c.l.b16 %v889
      %v929 = vunpack.c.l.b16 %v890
      %v930 = vunpack.c.l.b16 %v891
      %v931 = vunpack.c.l.b16 %v892
      %v932 = vunpack.c.l.b16 %v893
      %v933 = vunpack.c.l.b16 %v894
      %v934 = vunpack.c.l.b16 %v895
      %v935 = vunpack.c.l.b16 %v896
      %v936 = vunpack.c.l.b16 %v897
      %v937 = vpack.c.b16 %v922, %v921
      %v938 = vpack.c.b16 %v924, %v923
      %v939 = vpack.c.b16 %v926, %v925
      %v940 = vpack.c.b16 %v928, %v927
      %v941 = vpack.c.b16 %v930, %v929
      %v942 = vpack.c.b16 %v932, %v931
      %v943 = vpack.c.b16 %v934, %v933
      %v944 = vpack.c.b16 %v936, %v935
      %953 = vmatprep.subr.bf16.mxu0 0
      %954 = vmatpush1.bf16.msra.mxu0 %v937
      %955 = vmatprep.subr.bf16.mxu0 0
      %956 = vmatpush1.bf16.msra.mxu0 %v938
      %957 = vmatprep.subr.bf16.mxu0 0
      %958 = vmatpush1.bf16.msra.mxu0 %v939
      %959 = vmatprep.subr.bf16.mxu0 0
      %960 = vmatpush1.bf16.msra.mxu0 %v940
      %961 = vmatprep.subr.bf16.mxu0 0
      %962 = vmatpush1.bf16.msra.mxu0 %v941
      %963 = vmatprep.subr.bf16.mxu0 0
      %964 = vmatpush1.bf16.msra.mxu0 %v942
      %965 = vmatprep.subr.bf16.mxu0 0
      %966 = vmatpush1.bf16.msra.mxu0 %v943
      %967 = vmatprep.subr.bf16.mxu0 0
      %968 = vmatpush1.bf16.msra.mxu0 %v944
      %969 = vmatprep.subr.bf16.mxu0 0
      %970 = vmatpush1.bf16.msra.mxu0 0
      %971 = vmatprep.subr.bf16.mxu0 0
      %972 = vmatpush1.bf16.msra.mxu0 0
      %973 = vmatprep.subr.bf16.mxu0 0
      %974 = vmatpush1.bf16.msra.mxu0 0
      %975 = vmatprep.subr.bf16.mxu0 0
      %976 = vmatpush1.bf16.msra.mxu0 0
      %977 = vmatprep.subr.bf16.mxu0 0
      %978 = vmatpush1.bf16.msra.mxu0 0
      %979 = vmatprep.subr.bf16.mxu0 0
      %980 = vmatpush1.bf16.msra.mxu0 0
      %981 = vmatprep.subr.bf16.mxu0 0
      %982 = vmatpush1.bf16.msra.mxu0 0
      %983 = vmatprep.subr.bf16.mxu0 0
      %984 = vmatpush1.bf16.msra.mxu0 0
      %985 = vmatprep.mubr.bf16.mxu0 0
      %986 = vmatmul.mubr.bf16.gmra.mrb[0].mxu0 %v880
      %v987 = vpop.f32.mrb[0].mxu0
      %v988 = vadd.f32 %v903, %v987
      %v989 = vpop.f32.mrb[0].mxu0
      %v990 = vpop.f32.mrb[0].mxu0
      %v991 = vadd.f32 %v903, %v990
      %v992 = vpop.f32.mrb[0].mxu0
      %993 = vmatprep.mubr.bf16.mxu0 0
      %994 = vmatmul.mubr.bf16.gmra.mrb[0].mxu0 %v881
      %v995 = vpop.f32.mrb[0].mxu0
      %v996 = vadd.f32 %v903, %v995
      %v997 = vpop.f32.mrb[0].mxu0
      %v998 = vpop.f32.mrb[0].mxu0
      %v999 = vadd.f32 %v903, %v998
      %v1000 = vpop.f32.mrb[0].mxu0
      %1001 = vdwg.mxu0
      %v1002 = vpack.c.bf16 %v991, %v988
      %v1003 = vpack.c.bf16 %v999, %v996
      %v1006 = vunpack.c.l.b16 %v1002
      %v1007 = vunpack.c.h.b16 %v1002
      %v1008 = vunpack.c.l.b16 %v1003
      %v1009 = vunpack.c.h.b16 %v1003
      %v1010 = vpack.c.b16 %v1006, %v1006
      %v1011 = vpack.c.b16 %v1007, %v1007
      %v1012 = vpack.c.b16 %v1008, %v1008
      %v1013 = vpack.c.b16 %v1009, %v1009
      %1018 = vst [vmem:[%s229] sm:$0xf] %v1010
      %1019 = vst [vmem:[%s229 + $0x4] sm:$0xf] %v1011
      %1020 = vst [vmem:[%s229 + $0x8] sm:$0xf] %v1012
      %1021 = vst [vmem:[%s229 + $0xc] sm:$0xf] %v1013
      %s1022 = smul.u32 4, %s16
      %p1023 = scmp.lt.s32.totalorder %s1022, 7
      %s1024 = scalar_select %p1023, %s1022, 7
      %s1025 = smul.addr %s1024, 4
      %s1026 = scalar_lea.vmem %s5, %s1025
      // Predicated region
      $region41: #{canonical_mnist_forward.1} parent=39 // pred_check
        %p1027 = pneg %p144
      $region42: #{canonical_mnist_forward.1} parent=39 // pred_check_branch
        %1029 = sbr.rel (%p1027) target = $region44
      $region43: #{canonical_mnist_forward.1} parent=39 // pred_region
        %s1030 = smul.u32 4, %s16
      $region44: #{canonical_mnist_forward.1} parent=39 // pred_fallthru
        _
    $region40: #{canonical_mnist_forward.1} parent=5 // pred_fallthru
      _
    %p1031 = scmp.le.s32.totalorder 2, %s11
    // Predicated region
    $region45: #{canonical_mnist_forward.1} parent=5 // pred_check
      %p1032 = pneg %p1031
    $region46: #{canonical_mnist_forward.1} parent=5 // pred_check_branch
      %1034 = sbr.rel (%p1032) target = $region48
    $region47: #{canonical_mnist_forward.1} parent=5 // pred_region
      %s1035 = ssub.s32 %s11, 2
      // Predicated region
      $region49: #{canonical_mnist_forward.1} parent=47 // pred_check
        %p1036 = pneg %p150
      $region50: #{canonical_mnist_forward.1} parent=47 // pred_check_branch
        %1038 = sbr.rel (%p1036) target = $region52
      $region51: #{canonical_mnist_forward.1} parent=47 // pred_region
        %s1039 = smul.u32 4, %s17
        %p1040 = scmp.lt.s32.totalorder %s1039, 7
        %s1041 = scalar_select %p1040, %s1039, 7
        %s1042 = smul.addr %s1041, 4
        %s1043 = scalar_lea.vmem %s5, %s1042
      $region52: #{canonical_mnist_forward.1} parent=47 // pred_fallthru
        _
    $region48: #{canonical_mnist_forward.1} parent=5 // pred_fallthru
      _
  $region6: #{canonical_mnist_forward.1} parent=0 // loop_footer
    %s15 = sadd.s32 1, %s11
  $region7: #{canonical_mnist_forward.1} parent=0 // loop_footer_branch
    %10 = sbr.rel target = $region3
  $region8: #{canonical_mnist_forward.1} parent=0 // loop_exit
    _

</llo_original>
